<compile_context>
chip_gen: v6e
topology: v6e:2x2x1
jax: 0.10.0
libtpu: 0.0.40
codegen_flags: <defaults>
</compile_context>

<pallas_src>
import jax
import jax.numpy as jnp
from jax.experimental import pallas as pl
from jax.experimental.pallas import tpu as pltpu


def _complex_relu_kernel(real_ref, imag_ref, out_real_ref, out_imag_ref):
    real = real_ref[...]
    imag = imag_ref[...]
    keep = real >= 0
    zero = jnp.zeros((), real.dtype)
    out_real_ref[...] = jnp.where(keep, real, zero)
    out_imag_ref[...] = jnp.where(keep, imag, zero)


def complex_relu(
    real: jax.Array,
    imag: jax.Array,
    *,
    lane: int = 512,                      # lane-dense slab width (multiple of 128)
    target_block_bytes: int = 2 * 1024 * 1024,  # ~2 MiB per operand per block
):
    """Apply the complex ReLU to real/imag feature tensors of any shape."""
    assert real.shape == imag.shape, "real and imag must have the same shape"
    assert real.dtype == imag.dtype, "real and imag must have the same dtype"

    orig_shape = real.shape
    dtype = real.dtype
    itemsize = jnp.dtype(dtype).itemsize
    total = int(real.size)

    # --- Flatten into a lane-dense 2-D slab ---------------------------------
    real_flat = real.reshape(-1)
    imag_flat = imag.reshape(-1)

    padded_total = ((total + lane - 1) // lane) * lane
    pad = padded_total - total
    if pad:
        # Only taken when total isn't a multiple of `lane`; padded values are
        # computed but discarded on the way out.
        real_flat = jnp.pad(real_flat, (0, pad))
        imag_flat = jnp.pad(imag_flat, (0, pad))

    rows = padded_total // lane
    real2d = real_flat.reshape(rows, lane)
    imag2d = imag_flat.reshape(rows, lane)

    # --- Choose block size --------------------------------------------------
    # ~target_block_bytes per operand, rounded to a multiple of 8 sublanes.
    target_rows = max(8, (target_block_bytes // (lane * itemsize)) // 8 * 8)
    # Cap at half the rows (8-aligned) so the grid has >= 2 parallel steps
    # whenever the data allows it (helps v7x megacore).
    half_rows_aligned = (((rows + 1) // 2 + 7) // 8) * 8
    block_rows = min(target_rows, half_rows_aligned, rows)
    # Block must be a multiple of 8 sublanes unless it spans all rows.
    if block_rows < rows and block_rows % 8 != 0:
        block_rows = max(8, (block_rows // 8) * 8)

    grid = (pl.cdiv(rows, block_rows),)
    block = pl.BlockSpec((block_rows, lane), lambda i: (i, 0))

    out_shape = (
        jax.ShapeDtypeStruct((rows, lane), dtype),
        jax.ShapeDtypeStruct((rows, lane), dtype),
    )

    out_real2d, out_imag2d = pl.pallas_call(
        _complex_relu_kernel,
        out_shape=out_shape,
        grid_spec=pltpu.PrefetchScalarGridSpec(
            num_scalar_prefetch=0,
            grid=grid,
            in_specs=[block, block],
            out_specs=[block, block],
        ),
        compiler_params=pltpu.CompilerParams(
            dimension_semantics=("parallel",),
            vmem_limit_bytes=32 * 1024 * 1024,
        ),
    )(real2d, imag2d)

    # --- Undo the layout plumbing -------------------------------------------
    out_real = out_real2d.reshape(-1)[:total].reshape(orig_shape)
    out_imag = out_imag2d.reshape(-1)[:total].reshape(orig_shape)
    return out_real, out_imag


def _reference(real, imag):
    mask = (real >= 0).astype(real.dtype)
    return mask * real, mask * imag


if __name__ == "__main__":
    key = jax.random.PRNGKey(0)
    k_real, k_imag, k_real2, k_imag2 = jax.random.split(key, 4)

    # Module-consistent shapes: 128 nodes x 32 hidden features.
    N, F = 128, 32
    real = jax.random.normal(k_real, (N, F), dtype=jnp.float32)
    imag = jax.random.normal(k_imag, (N, F), dtype=jnp.float32)

    out_real, out_imag = complex_relu(real, imag)
    jax.block_until_ready((out_real, out_imag))

    ref_real, ref_imag = _reference(real, imag)
    assert out_real.shape == real.shape and out_imag.shape == imag.shape
    assert jnp.allclose(out_real, ref_real), "real part mismatch"
    assert jnp.allclose(out_imag, ref_imag), "imag part mismatch"

    # Second small check with sizes that exercise the padding path.
    N2, F2 = 37, 25
    real_b = jax.random.normal(k_real2, (N2, F2), dtype=jnp.float32)
    imag_b = jax.random.normal(k_imag2, (N2, F2), dtype=jnp.float32)
    out_real_b, out_imag_b = complex_relu(real_b, imag_b)
    jax.block_until_ready((out_real_b, out_imag_b))
    ref_real_b, ref_imag_b = _reference(real_b, imag_b)
    assert jnp.allclose(out_real_b, ref_real_b), "real part mismatch (padded path)"
    assert jnp.allclose(out_imag_b, ref_imag_b), "imag part mismatch (padded path)"

    print("KERNEL_OK")
</pallas_src>

<mosaic_0001>
module attributes {stable_mosaic.version = 11 : i64} {
  func.func @_complex_relu_kernel(%arg0: i32, %arg1: memref<8x512xf32, #tpu.memory_space<vmem>>, %arg2: memref<8x512xf32, #tpu.memory_space<vmem>>, %arg3: memref<8x512xf32, #tpu.memory_space<vmem>>, %arg4: memref<8x512xf32, #tpu.memory_space<vmem>>) attributes {dimension_semantics = [#tpu.dimension_semantics<parallel>], iteration_bounds = array<i64: 1>, scalar_prefetch = 0 : i64, scratch_operands = 0 : i64, tpu.core_type = #tpu.core_type<tc>, window_params = [{transform_indices = @transform_0, window_bounds = array<i64: 8, 512>}, {transform_indices = @transform_1, window_bounds = array<i64: 8, 512>}, {transform_indices = @transform_2, window_bounds = array<i64: 8, 512>}, {transform_indices = @transform_3, window_bounds = array<i64: 8, 512>}]} {
    %c0 = arith.constant 0 : index
    %c0_0 = arith.constant 0 : index
    %0 = vector.load %arg1[%c0, %c0_0] : memref<8x512xf32, #tpu.memory_space<vmem>>, vector<8x512xf32>
    %c0_1 = arith.constant 0 : index
    %c0_2 = arith.constant 0 : index
    %1 = vector.load %arg2[%c0_1, %c0_2] : memref<8x512xf32, #tpu.memory_space<vmem>>, vector<8x512xf32>
    %cst = arith.constant 0.000000e+00 : f32
    %2 = vector.broadcast %cst : f32 to vector<8x512xf32>
    %3 = arith.cmpf oge, %0, %2 : vector<8x512xf32>
    %cst_3 = arith.constant 0.000000e+00 : f32
    %4 = vector.broadcast %cst_3 : f32 to vector<8x512xf32>
    %5 = arith.select %3, %0, %4 : vector<8x512xi1>, vector<8x512xf32>
    %c0_4 = arith.constant 0 : index
    %c0_5 = arith.constant 0 : index
    %6 = vector.load %arg3[%c0_4, %c0_5] : memref<8x512xf32, #tpu.memory_space<vmem>>, vector<8x512xf32>
    tpu.vector_store %arg3[%c0_4, %c0_5], %5 {strides = array<i32>} : memref<8x512xf32, #tpu.memory_space<vmem>>, vector<8x512xf32>,
    %cst_6 = arith.constant 0.000000e+00 : f32
    %7 = vector.broadcast %cst_6 : f32 to vector<8x512xf32>
    %8 = arith.select %3, %1, %7 : vector<8x512xi1>, vector<8x512xf32>
    %c0_7 = arith.constant 0 : index
    %c0_8 = arith.constant 0 : index
    %9 = vector.load %arg4[%c0_7, %c0_8] : memref<8x512xf32, #tpu.memory_space<vmem>>, vector<8x512xf32>
    tpu.vector_store %arg4[%c0_7, %c0_8], %8 {strides = array<i32>} : memref<8x512xf32, #tpu.memory_space<vmem>>, vector<8x512xf32>,
    return
  }
  func.func @transform_0(%arg0: i32) -> (i32, i32) {
    %c0_i32 = arith.constant 0 : i32
    %c0_i32_0 = arith.constant 0 : i32
    return %arg0, %c0_i32 : i32, i32
  }
  func.func @transform_1(%arg0: i32) -> (i32, i32) {
    %c0_i32 = arith.constant 0 : i32
    %c0_i32_0 = arith.constant 0 : i32
    return %arg0, %c0_i32 : i32, i32
  }
  func.func @transform_2(%arg0: i32) -> (i32, i32) {
    %c0_i32 = arith.constant 0 : i32
    %c0_i32_0 = arith.constant 0 : i32
    return %arg0, %c0_i32 : i32, i32
  }
  func.func @transform_3(%arg0: i32) -> (i32, i32) {
    %c0_i32 = arith.constant 0 : i32
    %c0_i32_0 = arith.constant 0 : i32
    return %arg0, %c0_i32 : i32, i32
  }
}

</mosaic_0001>

<llo_original>
// kernel: tpu_custom_call.1
$region0: #{tpu_custom_call.1}
  #allocation0 [shape = 'u32[]', space=smem, size = 0x4, offset = 0x4, fixed_abs, tag = 'smem constant byte address 0x4 - core index']
  #allocation1 [shape = 'u32[144,128]{1,0:T(1,128)}', space=vmem, size = 0x12000, scoped, tag = 'internal scratch']
  %s0 = inlined_call_operand.hbm [shape: f32[8,512], index: 0, kind: input, shape index: {}]
  %s1 = inlined_call_operand.hbm [shape: f32[8,512], index: 1, kind: input, shape index: {}]
  %s2 = inlined_call_operand.hbm [shape: f32[8,512], index: 2, kind: output, shape index: {0}]
  %s3 = inlined_call_operand.hbm [shape: f32[8,512], index: 3, kind: output, shape index: {1}]
  %4 = xla_tuple %s2, %s3
  %s5 = sld [smem:[#allocation0]]
  $region34: #{tpu_custom_call.1} parent=0
    _
  %s7 = ssub.s32 1, %s5
  %s8 = scalar_select 0, %s7, %s5
  $region1: #{tpu_custom_call.1} parent=0
    #allocation2 [shape = 'u8[16384]{0}', space=vmem, size = 0x4000, scoped, tag = 'input window, operand 0, single buffered']
    #allocation3 [shape = 's32[1]{0}', space=sflag, size = 0x4, scoped, tag = 'scoped memory for tpu_custom_call.1']
    #allocation4 [shape = 's32[1]{0}', space=sflag, size = 0x4, scoped, tag = 'scoped memory for tpu_custom_call.1']
    #allocation5 [shape = 'u8[16384]{0}', space=vmem, size = 0x4000, scoped, tag = 'input window, operand 1, single buffered']
    #allocation6 [shape = 's32[1]{0}', space=sflag, size = 0x4, scoped, tag = 'scoped memory for tpu_custom_call.1']
    #allocation7 [shape = 'u8[16384]{0}', space=vmem, size = 0x4000, scoped, tag = 'output window, operand 0, single buffered']
    #allocation8 [shape = 'u8[16384]{0}', space=vmem, size = 0x4000, scoped, tag = 'output window, operand 1, single buffered']
    #allocation9 [shape = 's32[1]{0}', space=sflag, size = 0x4, scoped, tag = 'scoped memory for tpu_custom_call.1']
    %9 = vsyncpa [#allocation3], 0
    %10 = vsyncpa [#allocation6], 0
    %11 = vsyncpa [#allocation4], 0
    %12 = vsyncpa [#allocation9], 0
    // Predicated region
    $region2: #{tpu_custom_call.1} parent=1 // pred_check
      _
    $region3: #{tpu_custom_call.1} parent=1 // pred_check_branch
      %14 = sbr.rel (0) target = $region5
    $region4: #{tpu_custom_call.1} parent=1 // pred_region
      %s16 = ssub.s32 512, 512
      %17 = vsyncadd [#allocation3], %s16
      %s19 = sshll.u32 [#allocation2], 4
      %s20 = int_to_ptr.vmem [resolvable:$true] %s19
      %22 = dma.hbm_to_vmem [thread:$0]  %s0, 512, %s20, [#allocation3]
    $region5: #{tpu_custom_call.1} parent=1 // pred_fallthru
      _
    // Predicated region
    $region6: #{tpu_custom_call.1} parent=1 // pred_check
      _
    $region7: #{tpu_custom_call.1} parent=1 // pred_check_branch
      %24 = sbr.rel (0) target = $region9
    $region8: #{tpu_custom_call.1} parent=1 // pred_region
      %s26 = ssub.s32 512, 512
      %27 = vsyncadd [#allocation6], %s26
      %s29 = sshll.u32 [#allocation5], 4
      %s30 = int_to_ptr.vmem [resolvable:$true] %s29
      %32 = dma.hbm_to_vmem [thread:$0]  %s1, 512, %s30, [#allocation6]
    $region9: #{tpu_custom_call.1} parent=1 // pred_fallthru
      _
    // Predicated region
    $region10: #{tpu_custom_call.1} parent=1 // pred_check
      _
    $region11: #{tpu_custom_call.1} parent=1 // pred_check_branch
      %34 = sbr.rel (0) target = $region13
    $region12: #{tpu_custom_call.1} parent=1 // pred_region
      %35 = dma.done [#allocation3], 512
    $region13: #{tpu_custom_call.1} parent=1 // pred_fallthru
      _
    // Predicated region
    $region14: #{tpu_custom_call.1} parent=1 // pred_check
      _
    $region15: #{tpu_custom_call.1} parent=1 // pred_check_branch
      %37 = sbr.rel (0) target = $region17
    $region16: #{tpu_custom_call.1} parent=1 // pred_region
      %38 = dma.done [#allocation6], 512
    $region17: #{tpu_custom_call.1} parent=1 // pred_fallthru
      _
    %v39 = vld [vmem:[#allocation2] sm:$0xff]
    %v40 = vld [vmem:[#allocation2 + $0x8] sm:$0xff]
    %v41 = vld [vmem:[#allocation2 + $0x10] sm:$0xff]
    %v42 = vld [vmem:[#allocation2 + $0x18] sm:$0xff]
    %v43 = vld [vmem:[#allocation5] sm:$0xff]
    %v44 = vld [vmem:[#allocation5 + $0x8] sm:$0xff]
    %v45 = vld [vmem:[#allocation5 + $0x10] sm:$0xff]
    %v46 = vld [vmem:[#allocation5 + $0x18] sm:$0xff]
    %vm47 = vcmp.ge.f32.partialorder %v39, 0.0
    %vm48 = vcmp.ge.f32.partialorder %v40, 0.0
    %vm49 = vcmp.ge.f32.partialorder %v41, 0.0
    %vm50 = vcmp.ge.f32.partialorder %v42, 0.0
    %v51 = vsel %vm47, %v39, 0.0
    %v52 = vsel %vm48, %v40, 0.0
    %v53 = vsel %vm49, %v41, 0.0
    %v54 = vsel %vm50, %v42, 0.0
    %55 = vst [vmem:[#allocation7] sm:$0xff] %v51
    %56 = vst [vmem:[#allocation7 + $0x8] sm:$0xff] %v52
    %57 = vst [vmem:[#allocation7 + $0x10] sm:$0xff] %v53
    %58 = vst [vmem:[#allocation7 + $0x18] sm:$0xff] %v54
    %v59 = vsel %vm47, %v43, 0.0
    %v60 = vsel %vm48, %v44, 0.0
    %v61 = vsel %vm49, %v45, 0.0
    %v62 = vsel %vm50, %v46, 0.0
    %63 = vst [vmem:[#allocation8] sm:$0xff] %v59
    %64 = vst [vmem:[#allocation8 + $0x8] sm:$0xff] %v60
    %65 = vst [vmem:[#allocation8 + $0x10] sm:$0xff] %v61
    %66 = vst [vmem:[#allocation8 + $0x18] sm:$0xff] %v62
    // Predicated region
    $region18: #{tpu_custom_call.1} parent=1 // pred_check
      _
    $region19: #{tpu_custom_call.1} parent=1 // pred_check_branch
      %68 = sbr.rel (0) target = $region21
    $region20: #{tpu_custom_call.1} parent=1 // pred_region
      %s70 = ssub.s32 512, 512
      %71 = vsyncadd [#allocation4], %s70
      %s73 = sshll.u32 [#allocation7], 4
      %s74 = int_to_ptr.vmem [resolvable:$true] %s73
      %76 = dma.vmem_to_hbm [thread:$0]  %s74, 512, %s2, [#allocation4]
    $region21: #{tpu_custom_call.1} parent=1 // pred_fallthru
      _
    // Predicated region
    $region22: #{tpu_custom_call.1} parent=1 // pred_check
      _
    $region23: #{tpu_custom_call.1} parent=1 // pred_check_branch
      %78 = sbr.rel (0) target = $region25
    $region24: #{tpu_custom_call.1} parent=1 // pred_region
      %s80 = ssub.s32 512, 512
      %81 = vsyncadd [#allocation9], %s80
      %s83 = sshll.u32 [#allocation8], 4
      %s84 = int_to_ptr.vmem [resolvable:$true] %s83
      %86 = dma.vmem_to_hbm [thread:$0]  %s84, 512, %s3, [#allocation9]
    $region25: #{tpu_custom_call.1} parent=1 // pred_fallthru
      _
    // Predicated region
    $region26: #{tpu_custom_call.1} parent=1 // pred_check
      _
    $region27: #{tpu_custom_call.1} parent=1 // pred_check_branch
      %88 = sbr.rel (0) target = $region29
    $region28: #{tpu_custom_call.1} parent=1 // pred_region
      %89 = dma.done [#allocation4], 512
    $region29: #{tpu_custom_call.1} parent=1 // pred_fallthru
      _
    // Predicated region
    $region30: #{tpu_custom_call.1} parent=1 // pred_check
      _
    $region31: #{tpu_custom_call.1} parent=1 // pred_check_branch
      %91 = sbr.rel (0) target = $region33
    $region32: #{tpu_custom_call.1} parent=1 // pred_region
      %92 = dma.done [#allocation9], 512
    $region33: #{tpu_custom_call.1} parent=1 // pred_fallthru
      _
    %93 = vsyncpa [#allocation3], 1
    %94 = vsyncpa [#allocation6], 1
    %95 = vsyncpa [#allocation4], 1
    %96 = vsyncpa [#allocation9], 1

</llo_original>
